<compile_context>
chip_gen: v6e
topology: v6e:2x2x1
jax: 0.10.0
libtpu: 0.0.40
codegen_flags: <defaults>
</compile_context>

<pallas_src>
import numpy as np
import jax
import jax.numpy as jnp
from jax.experimental import pallas as pl
from jax.experimental.pallas import tpu as pltpu


def _round_up(v, m):
    return (v + m - 1) // m * m


def _choose_tiles(n, f_pad, tm=512, tk=1024, vmem_budget=16 << 20):
    """Pick (TM, TK) tiles: as large as possible under a conservative VMEM
    budget (works with default scoped VMEM on v5e/v6e/v7x), respecting the
    bf16/int32 tiling rules (M multiple of 16, K multiple of 128)."""
    tm = min(tm, _round_up(max(n, 1), 16))     # bf16 sublane pack = 16
    tk = min(tk, _round_up(max(n, 1), 128))    # lane dim multiple of 128

    def vmem_bytes(_tm, _tk):
        # double-buffered bf16 inputs + (conservatively) double-buffered int32
        # output + f32 accumulator scratch
        return (2 * (_tm * _tk * 2 + _tk * f_pad * 2)
                + 2 * _tm * f_pad * 4
                + _tm * f_pad * 4)

    while tk > 128 and vmem_bytes(tm, tk) > vmem_budget:
        tk = max(128, (tk // 2) // 128 * 128)
    while tm > 16 and vmem_bytes(tm, tk) > vmem_budget:
        tm = max(16, (tm // 2) // 16 * 16)
    return tm, tk


def _wl_counts_kernel(adj_ref, x_ref, out_ref, acc_ref):
    k = pl.program_id(1)

    @pl.when(k == 0)
    def _():
        acc_ref[...] = jnp.zeros_like(acc_ref)

    # counts[i, c] += sum_j adj[i, j] * onehot(color_j)[c]   (MXU, f32 accumulate)
    acc_ref[...] += jnp.dot(adj_ref[...], x_ref[...],
                            preferred_element_type=jnp.float32)

    @pl.when(k == pl.num_programs(1) - 1)
    def _():
        out_ref[...] = acc_ref[...].astype(out_ref.dtype)


def wl_neighbor_counts(adj_bf16, x_onehot_bf16, *, tm, tk):
    """counts = adj @ x_onehot, tiled over (M, K) with a resident accumulator."""
    n_m, n_k = adj_bf16.shape
    _, f_pad = x_onehot_bf16.shape
    grid = (n_m // tm, n_k // tk)
    return pl.pallas_call(
        _wl_counts_kernel,
        out_shape=jax.ShapeDtypeStruct((n_m, f_pad), jnp.int32),
        grid_spec=pltpu.PrefetchScalarGridSpec(
            num_scalar_prefetch=0,
            grid=grid,
            in_specs=[
                pl.BlockSpec((tm, tk), lambda i, k: (i, k)),        # adj tile
                pl.BlockSpec((tk, f_pad), lambda i, k: (k, 0)),     # x tile
            ],
            out_specs=pl.BlockSpec((tm, f_pad), lambda i, k: (i, 0)),
            scratch_shapes=[pltpu.VMEM((tm, f_pad), jnp.float32)],
        ),
        compiler_params=pltpu.CompilerParams(
            dimension_semantics=("parallel", "arbitrary"),
            vmem_limit_bytes=32 * 1024 * 1024,
        ),
    )(adj_bf16, x_onehot_bf16)


class WLConvPallas:
    """WL operator: iteratively refines node colorings (PyTorch WLConv forward)."""

    def __init__(self):
        self.hashmap = {}

    def reset_parameters(self):
        self.hashmap = {}

    def __call__(self, x, edge_index):
        x = jnp.asarray(x)
        edge_index = jnp.asarray(edge_index)
        n = int(x.shape[0])

        if x.ndim > 1:
            # one-hot input (|V|, F_in): own color = argmax (done outside kernel)
            f = int(x.shape[1])
            colors = jnp.argmax(x, axis=-1).astype(jnp.int32)
            x_onehot = x.astype(jnp.bfloat16)
        else:
            # integer coloring (|V|,)
            colors_host = np.asarray(x)
            f = int(colors_host.max()) + 1 if n > 0 else 1
            colors = jnp.asarray(colors_host, dtype=jnp.int32)
            x_onehot = jax.nn.one_hot(colors, f, dtype=jnp.bfloat16)

        f_pad = _round_up(max(f, 1), 128)            # lane-dense counts output
        tm, tk = _choose_tiles(n, f_pad)
        n_pad_m = _round_up(n, tm)
        n_pad_k = _round_up(n, tk)

        # padded one-hot colors (zeros in padding rows/cols)
        x_p = jnp.zeros((n_pad_k, f_pad), jnp.bfloat16).at[:n, :f].set(x_onehot)

        # dense adjacency: adj[i, j] = multiplicity of edge j -> i
        # (rows = target nodes, matches torch_geometric "neighbors of i are
        #  x[row] where col == i").
        row, col = edge_index[0], edge_index[1]
        # TODO(synk): bf16 adj is exact only for edge multiplicities <= 256 and the
        # dense formulation is O(N^2); a scalar-prefetch CSR/segment-sum kernel
        # would be preferable for very large sparse graphs / huge multigraphs.
        adj = (jnp.zeros((n_pad_m, n_pad_k), jnp.float32)
               .at[col, row].add(1.0)).astype(jnp.bfloat16)

        counts = wl_neighbor_counts(adj, x_p, tm=tm, tk=tk)

        # single host sync for both device results
        colors_np, counts_np = jax.device_get(
            (colors, jax.block_until_ready(counts)))
        counts_np = np.asarray(counts_np)[:n, :f].astype(np.int64)
        colors_np = np.asarray(colors_np)

        # --- host relabeling (inherently sequential, data-dependent) ----------
        # Build, fully vectorized, the concatenated sorted-neighbor-color lists
        # (np.repeat of nonzero columns by their counts; nonzero is row-major so
        # columns are ascending within each row), then hash
        # (own_color, neighbor_bytes).  This preserves PyTorch's equivalence
        # classes and first-seen id order, independent of the one-hot width F.
        nz_rows, nz_cols = np.nonzero(counts_np)
        nz_vals = counts_np[nz_rows, nz_cols]
        sorted_neighbors = np.repeat(nz_cols.astype(np.int32), nz_vals)
        deg = counts_np.sum(axis=1)
        offsets = np.concatenate([np.zeros(1, dtype=np.int64),
                                  np.cumsum(deg, dtype=np.int64)])

        out = np.empty(n, dtype=np.int64)
        hashmap = self.hashmap
        for i in range(n):
            key = (int(colors_np[i]),
                   sorted_neighbors[offsets[i]:offsets[i + 1]].tobytes())
            idx = hashmap.get(key)
            if idx is None:
                idx = len(hashmap)
                hashmap[key] = idx
            out[i] = idx
        return jnp.asarray(out, dtype=jnp.int32)


class _ReferenceWL:
    """Pure-numpy reference mirroring the PyTorch loop semantics (stateful)."""

    def __init__(self):
        self.hashmap = {}

    def __call__(self, colors, edge_index, n):
        row = np.asarray(edge_index[0])
        col = np.asarray(edge_index[1])
        colors = np.asarray(colors)
        out = np.empty(n, dtype=np.int64)
        for i in range(n):
            neigh = sorted(int(c) for c in colors[row[col == i]])
            key = (int(colors[i]),) + tuple(neigh)
            if key not in self.hashmap:
                self.hashmap[key] = len(self.hashmap)
            out[i] = self.hashmap[key]
        return out


if __name__ == "__main__":
    N, F, E = 32, 8, 64
    key = jax.random.PRNGKey(0)
    k1, k2, k3 = jax.random.split(key, 3)

    colors0 = jax.random.randint(k1, (N,), 0, F)
    x = jax.nn.one_hot(colors0, F, dtype=jnp.float32)        # (N, F) one-hot

    src = jax.random.randint(k2, (E,), 0, N)
    dst = (src + jax.random.randint(k3, (E,), 1, N)) % N
    # undirected: include both directions
    edge_index = jnp.stack([jnp.concatenate([src, dst]),
                            jnp.concatenate([dst, src])]).astype(jnp.int32)

    conv = WLConvPallas()
    ref = _ReferenceWL()

    # iteration 1: one-hot input path
    out1 = jax.block_until_ready(conv(x, edge_index))
    ref1 = ref(colors0, edge_index, N)
    assert np.array_equal(np.asarray(out1), ref1), (np.asarray(out1), ref1)

    # iteration 2: integer-coloring input path (WL is iterative; hashmap persists)
    out2 = jax.block_until_ready(conv(out1, edge_index))
    ref2 = ref(ref1, edge_index, N)
    assert np.array_equal(np.asarray(out2), ref2), (np.asarray(out2), ref2)

    print("KERNEL_OK")
</pallas_src>

<mosaic_0001>
module attributes {stable_mosaic.version = 11 : i64} {
  func.func @_wl_counts_kernel(%arg0: i32, %arg1: i32, %arg2: memref<32x128xbf16, #tpu.memory_space<vmem>>, %arg3: memref<128x128xbf16, #tpu.memory_space<vmem>>, %arg4: memref<32x128xi32, #tpu.memory_space<vmem>>, %arg5: memref<32x128xf32, #tpu.memory_space<vmem>>) attributes {dimension_semantics = [#tpu.dimension_semantics<parallel>, #tpu.dimension_semantics<arbitrary>], iteration_bounds = array<i64: 1, 1>, scalar_prefetch = 0 : i64, scratch_operands = 1 : i64, tpu.core_type = #tpu.core_type<tc>, window_params = [{transform_indices = @transform_0, window_bounds = array<i64: 32, 128>}, {transform_indices = @transform_1, window_bounds = array<i64: 128, 128>}, {transform_indices = @transform_2, window_bounds = array<i64: 32, 128>}]} {
    %c0_i32 = arith.constant 0 : i32
    %0 = arith.cmpi eq, %arg1, %c0_i32 : i32
    %1 = arith.extui %0 : i1 to i32
    %c0_i32_0 = arith.constant 0 : i32
    %2 = arith.cmpi ne, %1, %c0_i32_0 : i32
    scf.if %2 {
      %cst_10 = arith.constant 0.000000e+00 : f32
      %12 = vector.broadcast %cst_10 : f32 to vector<32x128xf32>
      %c0_11 = arith.constant 0 : index
      %c0_12 = arith.constant 0 : index
      %13 = vector.load %arg5[%c0_11, %c0_12] : memref<32x128xf32, #tpu.memory_space<vmem>>, vector<32x128xf32>
      tpu.vector_store %arg5[%c0_11, %c0_12], %12 {strides = array<i32>} : memref<32x128xf32, #tpu.memory_space<vmem>>, vector<32x128xf32>,
    } else {
    }
    %c0 = arith.constant 0 : index
    %c0_1 = arith.constant 0 : index
    %3 = vector.load %arg5[%c0, %c0_1] : memref<32x128xf32, #tpu.memory_space<vmem>>, vector<32x128xf32>
    %c0_2 = arith.constant 0 : index
    %c0_3 = arith.constant 0 : index
    %4 = vector.load %arg2[%c0_2, %c0_3] : memref<32x128xbf16, #tpu.memory_space<vmem>>, vector<32x128xbf16>
    %c0_4 = arith.constant 0 : index
    %c0_5 = arith.constant 0 : index
    %5 = vector.load %arg3[%c0_4, %c0_5] : memref<128x128xbf16, #tpu.memory_space<vmem>>, vector<128x128xbf16>
    %cst = arith.constant dense<0.000000e+00> : vector<32x128xf32>
    %6 = tpu.matmul %4, %5, %cst {dimension_numbers = #tpu.dot_dimension_numbers<[1], [0], [0], [1], [0, 0, 1, 1], [], []>} : vector<32x128xbf16>, vector<128x128xbf16>, vector<32x128xf32> -> vector<32x128xf32>
    %7 = arith.addf %3, %6 : vector<32x128xf32>
    %c0_6 = arith.constant 0 : index
    %c0_7 = arith.constant 0 : index
    %8 = vector.load %arg5[%c0_6, %c0_7] : memref<32x128xf32, #tpu.memory_space<vmem>>, vector<32x128xf32>
    tpu.vector_store %arg5[%c0_6, %c0_7], %7 {strides = array<i32>} : memref<32x128xf32, #tpu.memory_space<vmem>>, vector<32x128xf32>,
    %c0_i32_8 = arith.constant 0 : i32
    %9 = arith.cmpi eq, %arg1, %c0_i32_8 : i32
    %10 = arith.extui %9 : i1 to i32
    %c0_i32_9 = arith.constant 0 : i32
    %11 = arith.cmpi ne, %10, %c0_i32_9 : i32
    scf.if %11 {
      %c0_10 = arith.constant 0 : index
      %c0_11 = arith.constant 0 : index
      %12 = vector.load %arg5[%c0_10, %c0_11] : memref<32x128xf32, #tpu.memory_space<vmem>>, vector<32x128xf32>
      %13 = arith.fptosi %12 : vector<32x128xf32> to vector<32x128xi32>
      %c0_12 = arith.constant 0 : index
      %c0_13 = arith.constant 0 : index
      %14 = vector.load %arg4[%c0_12, %c0_13] : memref<32x128xi32, #tpu.memory_space<vmem>>, vector<32x128xi32>
      tpu.vector_store %arg4[%c0_12, %c0_13], %13 {strides = array<i32>} : memref<32x128xi32, #tpu.memory_space<vmem>>, vector<32x128xi32>,
    } else {
    }
    return
  }
  func.func @transform_0(%arg0: i32, %arg1: i32) -> (i32, i32) {
    %c0_i32 = arith.constant 0 : i32
    return %arg0, %arg1 : i32, i32
  }
  func.func @transform_1(%arg0: i32, %arg1: i32) -> (i32, i32) {
    %c0_i32 = arith.constant 0 : i32
    %c0_i32_0 = arith.constant 0 : i32
    return %arg1, %c0_i32 : i32, i32
  }
  func.func @transform_2(%arg0: i32, %arg1: i32) -> (i32, i32) {
    %c0_i32 = arith.constant 0 : i32
    %c0_i32_0 = arith.constant 0 : i32
    return %arg0, %c0_i32 : i32, i32
  }
}

</mosaic_0001>

<llo_original>
// kernel: tpu_custom_call.1
$region0: #{tpu_custom_call.1}
  #allocation0 [shape = 'u32[]', space=smem, size = 0x4, offset = 0x4, fixed_abs, tag = 'smem constant byte address 0x4 - core index']
  #allocation1 [shape = 'u32[144,128]{1,0:T(1,128)}', space=vmem, size = 0x12000, scoped, tag = 'internal scratch']
  #allocation2 [shape = 'f32[32,128]{1,0:T(8,128)}', space=vmem, size = 0x4000, scoped, tag = 'scratch operand']
  %s0 = inlined_call_operand.hbm [shape: bf16[32,128], index: 0, kind: input, shape index: {}]
  %s1 = inlined_call_operand.hbm [shape: bf16[128,128], index: 1, kind: input, shape index: {}]
  %s2 = inlined_call_operand.hbm [shape: s32[32,128], index: 2, kind: output, shape index: {}]
  %s3 = sld [smem:[#allocation0]]
  $region34: #{tpu_custom_call.1} parent=0
    _
  %s5 = ssub.s32 1, %s3
  %s6 = scalar_select 0, %s5, %s3
  $region1: #{tpu_custom_call.1} parent=0
    #allocation3 [shape = 'u8[8192]{0}', space=vmem, size = 0x2000, scoped, tag = 'input window, operand 0, single buffered']
    #allocation4 [shape = 's32[1]{0}', space=sflag, size = 0x4, scoped, tag = 'scoped memory for tpu_custom_call.1']
    #allocation5 [shape = 's32[1]{0}', space=sflag, size = 0x4, scoped, tag = 'scoped memory for tpu_custom_call.1']
    #allocation6 [shape = 'u8[32768]{0}', space=vmem, size = 0x8000, scoped, tag = 'input window, operand 1, single buffered']
    #allocation7 [shape = 's32[1]{0}', space=sflag, size = 0x4, scoped, tag = 'scoped memory for tpu_custom_call.1']
    #allocation8 [shape = 'u8[16384]{0}', space=vmem, size = 0x4000, scoped, tag = 'output window, operand 0, single buffered']
    %7 = vsyncpa [#allocation4], 0
    %8 = vsyncpa [#allocation7], 0
    %9 = vsyncpa [#allocation5], 0
    // Predicated region
    $region2: #{tpu_custom_call.1} parent=1 // pred_check
      _
    $region3: #{tpu_custom_call.1} parent=1 // pred_check_branch
      %11 = sbr.rel (0) target = $region5
    $region4: #{tpu_custom_call.1} parent=1 // pred_region
      %s13 = ssub.s32 256, 256
      %14 = vsyncadd [#allocation4], %s13
      %s15 = sshll.u32 [#allocation3], 4
      %s16 = int_to_ptr.vmem [resolvable:$true] %s15
      %21 = dma.hbm_to_vmem [thread:$0]  %s0, 256, %s16, [#allocation4], 64, 64, 4
    $region5: #{tpu_custom_call.1} parent=1 // pred_fallthru
      _
    // Predicated region
    $region6: #{tpu_custom_call.1} parent=1 // pred_check
      _
    $region7: #{tpu_custom_call.1} parent=1 // pred_check_branch
      %23 = sbr.rel (0) target = $region9
    $region8: #{tpu_custom_call.1} parent=1 // pred_region
      %s25 = ssub.s32 1024, 1024
      %26 = vsyncadd [#allocation7], %s25
      %s27 = sshll.u32 [#allocation6], 4
      %s28 = int_to_ptr.vmem [resolvable:$true] %s27
      %33 = dma.hbm_to_vmem [thread:$0]  %s1, 1024, %s28, [#allocation7], 64, 64, 4
    $region9: #{tpu_custom_call.1} parent=1 // pred_fallthru
      _
    // Predicated region
    $region10: #{tpu_custom_call.1} parent=1 // pred_check
      _
    $region11: #{tpu_custom_call.1} parent=1 // pred_check_branch
      %35 = sbr.rel (0) target = $region13
    $region12: #{tpu_custom_call.1} parent=1 // pred_region
      %36 = dma.done [#allocation4], 256
    $region13: #{tpu_custom_call.1} parent=1 // pred_fallthru
      _
    // Predicated region
    $region14: #{tpu_custom_call.1} parent=1 // pred_check
      _
    $region15: #{tpu_custom_call.1} parent=1 // pred_check_branch
      %38 = sbr.rel (0) target = $region17
    $region16: #{tpu_custom_call.1} parent=1 // pred_region
      %39 = dma.done [#allocation7], 1024
    $region17: #{tpu_custom_call.1} parent=1 // pred_fallthru
      _
    %p41 = scmp.eq.s32.totalorder 0, 0
    // Predicated region
    $region18: #{tpu_custom_call.1} parent=1 // pred_check
      %p42 = pneg %p41
    $region19: #{tpu_custom_call.1} parent=1 // pred_check_branch
      %44 = sbr.rel (%p42) target = $region21
    $region20: #{tpu_custom_call.1} parent=1 // pred_region
      %45 = vst [vmem:[#allocation2] sm:$0xff] 0.0
      %46 = vst [vmem:[#allocation2 + $0x8] sm:$0xff] 0.0
      %47 = vst [vmem:[#allocation2 + $0x10] sm:$0xff] 0.0
      %48 = vst [vmem:[#allocation2 + $0x18] sm:$0xff] 0.0
    $region21: #{tpu_custom_call.1} parent=1 // pred_fallthru
      _
    %v49 = vld [vmem:[#allocation2] sm:$0xff]
    %v50 = vld [vmem:[#allocation2 + $0x8] sm:$0xff]
    %v51 = vld [vmem:[#allocation2 + $0x10] sm:$0xff]
    %v52 = vld [vmem:[#allocation2 + $0x18] sm:$0xff]
    %v53 = vld [vmem:[#allocation3] sm:$0xf]
    %v54 = vld [vmem:[#allocation3 + $0x4] sm:$0xf]
    %v55 = vld [vmem:[#allocation3 + $0x8] sm:$0xf]
    %v56 = vld [vmem:[#allocation3 + $0xc] sm:$0xf]
    %v57 = vld [vmem:[#allocation6] sm:$0xf]
    %v58 = vld [vmem:[#allocation6 + $0x4] sm:$0xf]
    %v59 = vld [vmem:[#allocation6 + $0x8] sm:$0xf]
    %v60 = vld [vmem:[#allocation6 + $0xc] sm:$0xf]
    %v61 = vld [vmem:[#allocation6 + $0x10] sm:$0xf]
    %v62 = vld [vmem:[#allocation6 + $0x14] sm:$0xf]
    %v63 = vld [vmem:[#allocation6 + $0x18] sm:$0xf]
    %v64 = vld [vmem:[#allocation6 + $0x1c] sm:$0xf]
    %v65 = vld [vmem:[#allocation6 + $0x20] sm:$0xf]
    %v66 = vld [vmem:[#allocation6 + $0x24] sm:$0xf]
    %v67 = vld [vmem:[#allocation6 + $0x28] sm:$0xf]
    %v68 = vld [vmem:[#allocation6 + $0x2c] sm:$0xf]
    %v69 = vld [vmem:[#allocation6 + $0x30] sm:$0xf]
    %v70 = vld [vmem:[#allocation6 + $0x34] sm:$0xf]
    %v71 = vld [vmem:[#allocation6 + $0x38] sm:$0xf]
    %v72 = vld [vmem:[#allocation6 + $0x3c] sm:$0xf]
    %v77 = vunpack.c.l.b16 %v53
    %v78 = vunpack.c.l.b16 %v54
    %v79 = vunpack.c.l.b16 %v55
    %v80 = vunpack.c.l.b16 %v56
    %v81 = vpack.c.b16 %v78, %v77
    %v82 = vpack.c.b16 %v80, %v79
    %v101 = vunpack.c.l.b16 %v57
    %v102 = vunpack.c.l.b16 %v58
    %v103 = vunpack.c.l.b16 %v59
    %v104 = vunpack.c.l.b16 %v60
    %v105 = vunpack.c.l.b16 %v61
    %v106 = vunpack.c.l.b16 %v62
    %v107 = vunpack.c.l.b16 %v63
    %v108 = vunpack.c.l.b16 %v64
    %v109 = vunpack.c.l.b16 %v65
    %v110 = vunpack.c.l.b16 %v66
    %v111 = vunpack.c.l.b16 %v67
    %v112 = vunpack.c.l.b16 %v68
    %v113 = vunpack.c.l.b16 %v69
    %v114 = vunpack.c.l.b16 %v70
    %v115 = vunpack.c.l.b16 %v71
    %v116 = vunpack.c.l.b16 %v72
    %v117 = vpack.c.b16 %v102, %v101
    %v118 = vpack.c.b16 %v104, %v103
    %v119 = vpack.c.b16 %v106, %v105
    %v120 = vpack.c.b16 %v108, %v107
    %v121 = vpack.c.b16 %v110, %v109
    %v122 = vpack.c.b16 %v112, %v111
    %v123 = vpack.c.b16 %v114, %v113
    %v124 = vpack.c.b16 %v116, %v115
    %133 = vmatprep.subr.bf16.mxu0 0
    %134 = vmatpush1.bf16.msra.mxu0 %v124
    %135 = vmatprep.subr.bf16.mxu0 0
    %136 = vmatpush1.bf16.msra.mxu0 %v123
    %137 = vmatprep.subr.bf16.mxu0 0
    %138 = vmatpush1.bf16.msra.mxu0 %v122
    %139 = vmatprep.subr.bf16.mxu0 0
    %140 = vmatpush1.bf16.msra.mxu0 %v121
    %141 = vmatprep.subr.bf16.mxu0 0
    %142 = vmatpush1.bf16.msra.mxu0 %v120
    %143 = vmatprep.subr.bf16.mxu0 0
    %144 = vmatpush1.bf16.msra.mxu0 %v119
    %145 = vmatprep.subr.bf16.mxu0 0
    %146 = vmatpush1.bf16.msra.mxu0 %v118
    %147 = vmatprep.subr.bf16.mxu0 0
    %148 = vmatpush1.bf16.msra.mxu0 %v117
    %149 = vmatprep.subr.bf16.mxu0 0
    %150 = vmatpush2.bf16.msra.mxu0 0
    %151 = vmatprep.subr.bf16.mxu0 0
    %152 = vmatpush2.bf16.msra.mxu0 0
    %153 = vmatprep.subr.bf16.mxu0 0
    %154 = vmatpush2.bf16.msra.mxu0 0
    %155 = vmatprep.subr.bf16.mxu0 0
    %156 = vmatpush2.bf16.msra.mxu0 0
    %157 = vmatprep.subr.bf16.mxu0 0
    %158 = vmatpush2.bf16.msra.mxu0 0
    %159 = vmatprep.subr.bf16.mxu0 0
    %160 = vmatpush2.bf16.msra.mxu0 0
    %161 = vmatprep.subr.bf16.mxu0 0
    %162 = vmatpush2.bf16.msra.mxu0 0
    %163 = vmatprep.subr.bf16.mxu0 0
    %164 = vmatpush2.bf16.msra.mxu0 0
    %165 = vmatprep.mubr.bf16.mxu0 0
    %166 = vmatmul.mubr.bf16.gmra.mxu0 %v81
    %v167 = vpop.f32.mrf.mxu0
    %v168 = vadd.f32 0.0, %v167
    %v169 = vpop.f32.mrf.mxu0
    %v170 = vpop.f32.mrf.mxu0
    %v171 = vadd.f32 0.0, %v170
    %v172 = vpop.f32.mrf.mxu0
    %173 = vmatprep.mubr.bf16.mxu0 0
    %174 = vmatmul.mubr.bf16.gmra.mxu0 %v82
    %v175 = vpop.f32.mrf.mxu0
    %v176 = vadd.f32 0.0, %v175
    %v177 = vpop.f32.mrf.mxu0
    %v178 = vpop.f32.mrf.mxu0
    %v179 = vadd.f32 0.0, %v178
    %v180 = vpop.f32.mrf.mxu0
    %181 = vdwg.mxu0
    %v182 = vadd.f32 %v49, %v168
    %v183 = vadd.f32 %v50, %v171
    %v184 = vadd.f32 %v51, %v176
    %v185 = vadd.f32 %v52, %v179
    %186 = vst [vmem:[#allocation2] sm:$0xff] %v182
    %187 = vst [vmem:[#allocation2 + $0x8] sm:$0xff] %v183
    %188 = vst [vmem:[#allocation2 + $0x10] sm:$0xff] %v184
    %189 = vst [vmem:[#allocation2 + $0x18] sm:$0xff] %v185
    // Predicated region
    $region22: #{tpu_custom_call.1} parent=1 // pred_check
      %p190 = pneg %p41
    $region23: #{tpu_custom_call.1} parent=1 // pred_check_branch
      %192 = sbr.rel (%p190) target = $region25
    $region24: #{tpu_custom_call.1} parent=1 // pred_region
      %v193 = vld [vmem:[#allocation2] sm:$0xff]
      %v194 = vld [vmem:[#allocation2 + $0x8] sm:$0xff]
      %v195 = vld [vmem:[#allocation2 + $0x10] sm:$0xff]
      %v196 = vld [vmem:[#allocation2 + $0x18] sm:$0xff]
      %v197 = vcvt.f32.s32.to.zero.pseudo %v193
      %v198 = vcvt.f32.s32.to.zero.pseudo %v194
      %v199 = vcvt.f32.s32.to.zero.pseudo %v195
      %v200 = vcvt.f32.s32.to.zero.pseudo %v196
      %201 = vst [vmem:[#allocation8] sm:$0xff] %v197
      %202 = vst [vmem:[#allocation8 + $0x8] sm:$0xff] %v198
      %203 = vst [vmem:[#allocation8 + $0x10] sm:$0xff] %v199
      %204 = vst [vmem:[#allocation8 + $0x18] sm:$0xff] %v200
    $region25: #{tpu_custom_call.1} parent=1 // pred_fallthru
      _
    // Predicated region
    $region26: #{tpu_custom_call.1} parent=1 // pred_check
      _
    $region27: #{tpu_custom_call.1} parent=1 // pred_check_branch
      %206 = sbr.rel (0) target = $region29
    $region28: #{tpu_custom_call.1} parent=1 // pred_region
      %s208 = ssub.s32 512, 512
      %209 = vsyncadd [#allocation5], %s208
      %s210 = sshll.u32 [#allocation8], 4
      %s211 = int_to_ptr.vmem [resolvable:$true] %s210
      %216 = dma.vmem_to_hbm [thread:$0]  %s211, 512, %s2, [#allocation5], 128, 128, 8
    $region29: #{tpu_custom_call.1} parent=1 // pred_fallthru
      _
    // Predicated region
    $region30: #{tpu_custom_call.1} parent=1 // pred_check
      _
    $region31: #{tpu_custom_call.1} parent=1 // pred_check_branch
      %218 = sbr.rel (0) target = $region33
    $region32: #{tpu_custom_call.1} parent=1 // pred_region
      %219 = dma.done [#allocation5], 512
    $region33: #{tpu_custom_call.1} parent=1 // pred_fallthru
      _
    %220 = vsyncpa [#allocation4], 1
    %221 = vsyncpa [#allocation7], 1
    %222 = vsyncpa [#allocation5], 1

</llo_original>
